<compile_context>
chip_gen: v5e
topology: v5e:2x2
jax: 0.10.0
libtpu: 0.0.40
codegen_flags: <defaults>
</compile_context>

<pallas_src>
import functools

import jax
import jax.numpy as jnp
from jax.experimental import pallas as pl
from jax.experimental.pallas import tpu as pltpu


# -----------------------------------------------------------------------------
# Tiling / budget helpers
# -----------------------------------------------------------------------------
_MAX_SINGLE_TILE_M = 512      # one resident (M, M) f32 tile (<= 1 MiB)
_MULTI_TILE_TM = 256          # output tile edge for the large-M fallback
_TK_CAP = 8192                # keep a few grid steps for DMA/compute overlap


def _round_up(x, m):
    return (x + m - 1) // m * m


def _vmem_budget_bytes():
    """Per-generation VMEM limit (v5e/v6e: 128 MiB, v7x: 64 MiB physical)."""
    try:
        cap = int(pltpu.get_tpu_info().vmem_capacity_bytes)
    except Exception:                       # unknown target / emulator
        cap = 64 * 1024 * 1024              # v7x-safe fallback
    return max(16 * 1024 * 1024, int(cap * 0.75))   # leave compiler headroom


def _pick_tk(K, row_bytes_per_lane, resident_bytes, budget):
    """Largest 128-multiple K tile whose double-buffered inputs fit the budget."""
    avail = int(budget * 0.85) - resident_bytes
    avail = max(avail, 2 * row_bytes_per_lane * 128)
    tk = avail // (2 * row_bytes_per_lane)          # x2: double-buffered inputs
    tk = max(128, min(_TK_CAP, (tk // 128) * 128))
    return int(min(tk, _round_up(K, 128)))


def _prep_features(x):
    """NCHW -> (M, K) feature matrix. No K padding (ragged tile masked in-kernel)."""
    a, b, c, d = x.shape
    M, K = a * b, c * d
    return x.reshape(M, K), M, K


def _mask_ragged_k(f, k_step, tk, k_true, needs_mask):
    """Zero lanes past the true K extent (only the last tile is ever ragged)."""
    if not needs_mask:
        return f
    lane = jax.lax.broadcasted_iota(jnp.int32, f.shape, dimension=1)
    return jnp.where(lane + k_step * tk < k_true, f, jnp.zeros_like(f))


# -----------------------------------------------------------------------------
# Single-output-tile kernels (M <= _MAX_SINGLE_TILE_M): one feature operand,
# grid = (K tiles,), output / accumulator resident across the reduction.
# -----------------------------------------------------------------------------
def _gram_single_kernel(f_ref, out_ref, *, inv_norm, tk, k_true, needs_mask):
    k = pl.program_id(0)

    @pl.when(k == 0)
    def _():
        out_ref[...] = jnp.zeros_like(out_ref)

    f = _mask_ragged_k(f_ref[...], k, tk, k_true, needs_mask)
    # F_tile @ F_tile^T on the MXU; the single operand is DMA'd only once.
    out_ref[...] += jax.lax.dot_general(
        f, f, dimension_numbers=(((1,), (1,)), ((), ())),
        preferred_element_type=jnp.float32)

    @pl.when(k == pl.num_programs(0) - 1)
    def _():
        out_ref[...] = out_ref[...] * inv_norm


def _gram_mse_single_kernel(f_ref, tgt_ref, loss_ref, acc_ref,
                            *, inv_norm, tk, k_true, needs_mask):
    k = pl.program_id(0)

    @pl.when(k == 0)
    def _():
        acc_ref[...] = jnp.zeros_like(acc_ref)

    f = _mask_ragged_k(f_ref[...], k, tk, k_true, needs_mask)
    acc_ref[...] += jax.lax.dot_general(
        f, f, dimension_numbers=(((1,), (1,)), ((), ())),
        preferred_element_type=jnp.float32)

    @pl.when(k == pl.num_programs(0) - 1)
    def _():
        diff = acc_ref[...] * inv_norm - tgt_ref[...]
        loss_ref[0, 0] = jnp.sum(diff * diff)      # un-normalized SSE


# -----------------------------------------------------------------------------
# Multi-tile fallback kernels (M > _MAX_SINGLE_TILE_M), grid = (i, j, k).
# TODO(synk): exploit Gram symmetry (compute only j >= i tiles, mirror/weight x2).
# -----------------------------------------------------------------------------
def _gram_multi_kernel(lhs_ref, rhs_ref, out_ref,
                       *, inv_norm, tk, k_true, needs_mask):
    k = pl.program_id(2)

    @pl.when(k == 0)
    def _():
        out_ref[...] = jnp.zeros_like(out_ref)

    lhs = _mask_ragged_k(lhs_ref[...], k, tk, k_true, needs_mask)
    rhs = _mask_ragged_k(rhs_ref[...], k, tk, k_true, needs_mask)
    out_ref[...] += jax.lax.dot_general(
        lhs, rhs, dimension_numbers=(((1,), (1,)), ((), ())),
        preferred_element_type=jnp.float32)

    @pl.when(k == pl.num_programs(2) - 1)
    def _():
        out_ref[...] = out_ref[...] * inv_norm


def _gram_mse_multi_kernel(lhs_ref, rhs_ref, tgt_ref, loss_ref, acc_ref,
                           *, inv_norm, tk, k_true, needs_mask):
    i = pl.program_id(0)
    j = pl.program_id(1)
    k = pl.program_id(2)

    # NOTE: the shared (1,1) SMEM accumulator is race-free ONLY because every
    # grid axis is "arbitrary" (sequential). Do not flip any axis to "parallel"
    # without switching to per-core partial losses.
    @pl.when((i == 0) & (j == 0) & (k == 0))
    def _():
        loss_ref[0, 0] = jnp.float32(0.0)

    @pl.when(k == 0)
    def _():
        acc_ref[...] = jnp.zeros_like(acc_ref)

    lhs = _mask_ragged_k(lhs_ref[...], k, tk, k_true, needs_mask)
    rhs = _mask_ragged_k(rhs_ref[...], k, tk, k_true, needs_mask)
    acc_ref[...] += jax.lax.dot_general(
        lhs, rhs, dimension_numbers=(((1,), (1,)), ((), ())),
        preferred_element_type=jnp.float32)

    @pl.when(k == pl.num_programs(2) - 1)
    def _():
        diff = acc_ref[...] * inv_norm - tgt_ref[...]
        loss_ref[0, 0] += jnp.sum(diff * diff)     # un-normalized SSE


# -----------------------------------------------------------------------------
# Wrappers
# -----------------------------------------------------------------------------
def gram_matrix(x, *, _force_tk=None):
    """Pallas gram matrix of an NCHW tensor, matching torch gram_matrix()."""
    a, b, c, d = x.shape
    feats, M, K = _prep_features(x)
    itemsize = jnp.dtype(x.dtype).itemsize
    inv_norm = 1.0 / float(a * b * c * d)
    budget = _vmem_budget_bytes()

    if M <= _MAX_SINGLE_TILE_M:
        # Fast path: single resident (M, M) output tile; features read once.
        resident = 2 * M * M * 4
        tk = _force_tk or _pick_tk(K, M * itemsize, resident, budget)
        kt = pl.cdiv(K, tk)
        needs_mask = (kt * tk != K)
        kernel = functools.partial(
            _gram_single_kernel, inv_norm=inv_norm, tk=tk, k_true=K,
            needs_mask=needs_mask)
        return pl.pallas_call(
            kernel,
            out_shape=jax.ShapeDtypeStruct((M, M), jnp.float32),
            grid_spec=pltpu.PrefetchScalarGridSpec(
                num_scalar_prefetch=0,
                grid=(kt,),
                in_specs=[pl.BlockSpec((M, tk), lambda k: (0, k))],
                out_specs=pl.BlockSpec((M, M), lambda k: (0, 0)),
            ),
            compiler_params=pltpu.CompilerParams(
                dimension_semantics=("arbitrary",),
                vmem_limit_bytes=budget),
        )(feats)

    # General path: tile the (M, M) output; megacore-friendly (i, j parallel).
    tm = tn = _MULTI_TILE_TM
    M_pad = _round_up(M, tm)
    if M_pad != M:
        feats = jnp.pad(feats, ((0, M_pad - M), (0, 0)))   # zero rows: G unchanged
    resident = 3 * tm * tn * 4
    tk = _force_tk or _pick_tk(K, (tm + tn) * itemsize, resident, budget)
    kt = pl.cdiv(K, tk)
    needs_mask = (kt * tk != K)
    kernel = functools.partial(
        _gram_multi_kernel, inv_norm=inv_norm, tk=tk, k_true=K,
        needs_mask=needs_mask)
    out = pl.pallas_call(
        kernel,
        out_shape=jax.ShapeDtypeStruct((M_pad, M_pad), jnp.float32),
        grid_spec=pltpu.PrefetchScalarGridSpec(
            num_scalar_prefetch=0,
            grid=(M_pad // tm, M_pad // tn, kt),
            in_specs=[pl.BlockSpec((tm, tk), lambda i, j, k: (i, k)),
                      pl.BlockSpec((tn, tk), lambda i, j, k: (j, k))],
            out_specs=pl.BlockSpec((tm, tn), lambda i, j, k: (i, j)),
        ),
        compiler_params=pltpu.CompilerParams(
            dimension_semantics=("parallel", "parallel", "arbitrary"),
            vmem_limit_bytes=budget),
    )(feats, feats)
    return out[:M, :M] if M_pad != M else out


def style_mse_loss(x, target_gram, *, _force_tk=None):
    """mse_loss(gram_matrix(x), target_gram) as a fused Pallas kernel."""
    a, b, c, d = x.shape
    feats, M, K = _prep_features(x)
    assert target_gram.shape == (M, M), "target gram / input feature mismatch"
    itemsize = jnp.dtype(x.dtype).itemsize
    inv_norm = 1.0 / float(a * b * c * d)
    inv_mm = 1.0 / float(M * M)
    budget = _vmem_budget_bytes()
    tgt = target_gram.astype(jnp.float32)

    if M <= _MAX_SINGLE_TILE_M:
        resident = 3 * M * M * 4          # f32 accumulator + buffered target tile
        tk = _force_tk or _pick_tk(K, M * itemsize, resident, budget)
        kt = pl.cdiv(K, tk)
        needs_mask = (kt * tk != K)
        kernel = functools.partial(
            _gram_mse_single_kernel, inv_norm=inv_norm, tk=tk, k_true=K,
            needs_mask=needs_mask)
        sse = pl.pallas_call(
            kernel,
            out_shape=jax.ShapeDtypeStruct((1, 1), jnp.float32),
            grid_spec=pltpu.PrefetchScalarGridSpec(
                num_scalar_prefetch=0,
                grid=(kt,),
                in_specs=[pl.BlockSpec((M, tk), lambda k: (0, k)),
                          pl.BlockSpec((M, M), lambda k: (0, 0))],
                out_specs=pl.BlockSpec((1, 1), lambda k: (0, 0),
                                       memory_space=pltpu.SMEM),
                scratch_shapes=[pltpu.VMEM((M, M), jnp.float32)],
            ),
            compiler_params=pltpu.CompilerParams(
                dimension_semantics=("arbitrary",),
                vmem_limit_bytes=budget),
        )(feats, tgt)
        return sse[0, 0] * inv_mm

    # General fallback: tiled gram with the fused MSE epilogue, sequential grid.
    tm = tn = _MULTI_TILE_TM
    M_pad = _round_up(M, tm)
    if M_pad != M:
        feats = jnp.pad(feats, ((0, M_pad - M), (0, 0)))
        tgt = jnp.pad(tgt, ((0, M_pad - M), (0, M_pad - M)))
    resident = 5 * tm * tn * 4
    tk = _force_tk or _pick_tk(K, (tm + tn) * itemsize, resident, budget)
    kt = pl.cdiv(K, tk)
    needs_mask = (kt * tk != K)
    kernel = functools.partial(
        _gram_mse_multi_kernel, inv_norm=inv_norm, tk=tk, k_true=K,
        needs_mask=needs_mask)
    sse = pl.pallas_call(
        kernel,
        out_shape=jax.ShapeDtypeStruct((1, 1), jnp.float32),
        grid_spec=pltpu.PrefetchScalarGridSpec(
            num_scalar_prefetch=0,
            grid=(M_pad // tm, M_pad // tn, kt),
            in_specs=[pl.BlockSpec((tm, tk), lambda i, j, k: (i, k)),
                      pl.BlockSpec((tn, tk), lambda i, j, k: (j, k)),
                      pl.BlockSpec((tm, tn), lambda i, j, k: (i, j))],
            out_specs=pl.BlockSpec((1, 1), lambda i, j, k: (0, 0),
                                   memory_space=pltpu.SMEM),
            scratch_shapes=[pltpu.VMEM((tm, tn), jnp.float32)],
        ),
        compiler_params=pltpu.CompilerParams(
            # Sequential grid required by the shared SMEM loss accumulator.
            dimension_semantics=("arbitrary", "arbitrary", "arbitrary"),
            vmem_limit_bytes=budget),
    )(feats, feats, tgt)
    return sse[0, 0] * inv_mm


# -----------------------------------------------------------------------------
# StyleLoss module equivalent.
# -----------------------------------------------------------------------------
class StyleLoss:
    def __init__(self, target_feature):
        # .detach() equivalent: stop_gradient on the precomputed target gram.
        self.target = jax.lax.stop_gradient(gram_matrix(target_feature))
        self.loss = None

    def __call__(self, x):
        # Fused Gram + MSE: G is never round-tripped through HBM.
        self.loss = style_mse_loss(x, self.target)
        return x  # forward returns its input unchanged (transparent layer)


# -----------------------------------------------------------------------------
# Reference (plain JAX) for verification.
# -----------------------------------------------------------------------------
def _gram_ref(x):
    a, b, c, d = x.shape
    f = x.reshape(a * b, c * d).astype(jnp.float32)
    g = jnp.matmul(f, f.T, precision=jax.lax.Precision.HIGHEST)
    return g / (a * b * c * d)


if __name__ == "__main__":
    key = jax.random.PRNGKey(0)
    k_t, k_x, k_rag, k_bt, k_bx = jax.random.split(key, 5)

    # Primary: NCHW batch=2, channels=4, 16x16 (single-output-tile fast path).
    target_feature = jax.random.normal(k_t, (2, 4, 16, 16), dtype=jnp.float32)
    x = jax.random.normal(k_x, (2, 4, 16, 16), dtype=jnp.float32)

    layer = StyleLoss(target_feature)
    out = jax.block_until_ready(layer(x))
    loss = jax.block_until_ready(layer.loss)

    g_ref = _gram_ref(x)
    t_ref = _gram_ref(target_feature)
    loss_ref = jnp.mean((g_ref - t_ref) ** 2)

    assert out.shape == x.shape and bool(jnp.allclose(out, x))
    assert bool(jnp.allclose(layer.target, t_ref, rtol=1e-4, atol=1e-6)), (
        "target gram mismatch")
    assert bool(jnp.allclose(loss, loss_ref, rtol=1e-4, atol=1e-6)), (
        loss, loss_ref)

    # Ragged-K in-kernel masking path (K=324 not a multiple of the forced 128 tile).
    xr = jax.random.normal(k_rag, (1, 8, 18, 18), dtype=jnp.float32)
    assert bool(jnp.allclose(gram_matrix(xr, _force_tk=128), _gram_ref(xr),
                             rtol=1e-4, atol=1e-6)), "ragged-K gram mismatch"

    # Multi-output-tile fallback path (M = 1024 > single-tile limit).
    tb = jax.random.normal(k_bt, (2, 512, 16, 16), dtype=jnp.float32)
    xb = jax.random.normal(k_bx, (2, 512, 16, 16), dtype=jnp.float32)
    big = StyleLoss(tb)
    _ = jax.block_until_ready(big(xb))
    big_loss = jax.block_until_ready(big.loss)
    big_ref = jnp.mean((_gram_ref(xb) - _gram_ref(tb)) ** 2)
    assert bool(jnp.allclose(big_loss, big_ref, rtol=1e-2, atol=1e-10)), (
        big_loss, big_ref)

    print("KERNEL_OK")
</pallas_src>

<mosaic_0001>
module attributes {stable_mosaic.version = 11 : i64} {
  func.func @_gram_single_kernel(%arg0: i32, %arg1: memref<8x256xf32, #tpu.memory_space<vmem>>, %arg2: memref<8x8xf32, #tpu.memory_space<vmem>>) attributes {dimension_semantics = [#tpu.dimension_semantics<arbitrary>], iteration_bounds = array<i64: 1>, scalar_prefetch = 0 : i64, scratch_operands = 0 : i64, tpu.core_type = #tpu.core_type<tc>, window_params = [{transform_indices = @transform_0, window_bounds = array<i64: 8, 256>}, {pipeline_mode = #tpu.pipeline_mode<synchronous>, transform_indices = @transform_1, window_bounds = array<i64: 8, 8>}]} {
    %c0_i32 = arith.constant 0 : i32
    %0 = arith.cmpi eq, %arg0, %c0_i32 : i32
    %1 = arith.extui %0 : i1 to i32
    %c0_i32_0 = arith.constant 0 : i32
    %2 = arith.cmpi ne, %1, %c0_i32_0 : i32
    scf.if %2 {
      %cst_8 = arith.constant 0.000000e+00 : f32
      %11 = vector.broadcast %cst_8 : f32 to vector<8x8xf32>
      %c0_9 = arith.constant 0 : index
      %c0_10 = arith.constant 0 : index
      %12 = vector.load %arg2[%c0_9, %c0_10] : memref<8x8xf32, #tpu.memory_space<vmem>>, vector<8x8xf32>
      tpu.vector_store %arg2[%c0_9, %c0_10], %11 {strides = array<i32>} : memref<8x8xf32, #tpu.memory_space<vmem>>, vector<8x8xf32>,
    } else {
    }
    %c0 = arith.constant 0 : index
    %c0_1 = arith.constant 0 : index
    %3 = vector.load %arg1[%c0, %c0_1] : memref<8x256xf32, #tpu.memory_space<vmem>>, vector<8x256xf32>
    %c0_2 = arith.constant 0 : index
    %c0_3 = arith.constant 0 : index
    %4 = vector.load %arg2[%c0_2, %c0_3] : memref<8x8xf32, #tpu.memory_space<vmem>>, vector<8x8xf32>
    %cst = arith.constant dense<0.000000e+00> : vector<8x8xf32>
    %5 = tpu.matmul %3, %3, %cst {dimension_numbers = #tpu.dot_dimension_numbers<[1], [1], [0], [0], [0, 0, 1, 0], [], []>} : vector<8x256xf32>, vector<8x256xf32>, vector<8x8xf32> -> vector<8x8xf32>
    %6 = arith.addf %4, %5 : vector<8x8xf32>
    %c0_4 = arith.constant 0 : index
    %c0_5 = arith.constant 0 : index
    %7 = vector.load %arg2[%c0_4, %c0_5] : memref<8x8xf32, #tpu.memory_space<vmem>>, vector<8x8xf32>
    tpu.vector_store %arg2[%c0_4, %c0_5], %6 {strides = array<i32>} : memref<8x8xf32, #tpu.memory_space<vmem>>, vector<8x8xf32>,
    %c0_i32_6 = arith.constant 0 : i32
    %8 = arith.cmpi eq, %arg0, %c0_i32_6 : i32
    %9 = arith.extui %8 : i1 to i32
    %c0_i32_7 = arith.constant 0 : i32
    %10 = arith.cmpi ne, %9, %c0_i32_7 : i32
    scf.if %10 {
      %c0_8 = arith.constant 0 : index
      %c0_9 = arith.constant 0 : index
      %11 = vector.load %arg2[%c0_8, %c0_9] : memref<8x8xf32, #tpu.memory_space<vmem>>, vector<8x8xf32>
      %cst_10 = arith.constant 4.8828125E-4 : f32
      %12 = vector.broadcast %cst_10 : f32 to vector<8x8xf32>
      %13 = arith.mulf %11, %12 : vector<8x8xf32>
      %c0_11 = arith.constant 0 : index
      %c0_12 = arith.constant 0 : index
      %14 = vector.load %arg2[%c0_11, %c0_12] : memref<8x8xf32, #tpu.memory_space<vmem>>, vector<8x8xf32>
      tpu.vector_store %arg2[%c0_11, %c0_12], %13 {strides = array<i32>} : memref<8x8xf32, #tpu.memory_space<vmem>>, vector<8x8xf32>,
    } else {
    }
    return
  }
  func.func @transform_0(%arg0: i32) -> (i32, i32) {
    %c0_i32 = arith.constant 0 : i32
    %c0_i32_0 = arith.constant 0 : i32
    return %c0_i32, %arg0 : i32, i32
  }
  func.func @transform_1(%arg0: i32) -> (i32, i32) {
    %c0_i32 = arith.constant 0 : i32
    %c0_i32_0 = arith.constant 0 : i32
    %c0_i32_1 = arith.constant 0 : i32
    return %c0_i32, %c0_i32_0 : i32, i32
  }
}

</mosaic_0001>

<llo_original>
// kernel: tpu_custom_call.1
$region0: #{tpu_custom_call.1}
  #allocation0 [shape = 'u32[]', space=smem, size = 0x4, offset = 0x4, fixed_abs, tag = 'smem constant byte address 0x4 - core index']
  #allocation1 [shape = 'u32[72,128]{1,0:T(1,128)}', space=vmem, size = 0x9000, scoped, tag = 'internal scratch']
  %s0 = inlined_call_operand.hbm [shape: f32[8,256], index: 0, kind: input, shape index: {}]
  %s1 = inlined_call_operand.hbm [shape: f32[8,8], index: 1, kind: output, shape index: {}]
  %s2 = sld [smem:[#allocation0]]
  $region26: #{tpu_custom_call.1} parent=0
    _
  %s4 = ssub.s32 1, %s2
  %s5 = scalar_select 0, %s4, %s2
  $region1: #{tpu_custom_call.1} parent=0
    #allocation2 [shape = 'u8[8192]{0}', space=vmem, size = 0x2000, scoped, tag = 'input window, operand 0, single buffered']
    #allocation3 [shape = 's32[1]{0}', space=sflag, size = 0x4, scoped, tag = 'scoped memory for tpu_custom_call.1']
    #allocation4 [shape = 's32[1]{0}', space=sflag, size = 0x4, scoped, tag = 'scoped memory for tpu_custom_call.1']
    #allocation5 [shape = 'u8[4096]{0}', space=vmem, size = 0x1000, scoped, tag = 'output window, operand 0, single buffered']
    %6 = vsyncpa [#allocation3], 0
    %7 = vsyncpa [#allocation4], 0
    // Predicated region
    $region2: #{tpu_custom_call.1} parent=1 // pred_check
      _
    $region3: #{tpu_custom_call.1} parent=1 // pred_check_branch
      %9 = sbr.rel (0) target = $region5
    $region4: #{tpu_custom_call.1} parent=1 // pred_region
      %11 = vsyncadd [#allocation3], 0
      %s13 = sshll.u32 %s0, 4
      %s14 = int_to_ptr.hbm [resolvable:$true] %s13
      %s15 = sshll.u32 [#allocation2], 4
      %s16 = int_to_ptr.vmem [resolvable:$true] %s15
      %18 = dma.hbm_to_vmem [thread:$0]  %s14, 256, %s16, [#allocation3]
    $region5: #{tpu_custom_call.1} parent=1 // pred_fallthru
      _
    // Predicated region
    $region6: #{tpu_custom_call.1} parent=1 // pred_check
      _
    $region7: #{tpu_custom_call.1} parent=1 // pred_check_branch
      %20 = sbr.rel (0) target = $region9
    $region8: #{tpu_custom_call.1} parent=1 // pred_region
      %22 = dma.done [#allocation3], 256
    $region9: #{tpu_custom_call.1} parent=1 // pred_fallthru
      _
    %p23 = scmp.eq.s32.totalorder 0, 0
    // Predicated region
    $region10: #{tpu_custom_call.1} parent=1 // pred_check
      %p24 = pneg %p23
    $region11: #{tpu_custom_call.1} parent=1 // pred_check_branch
      %26 = sbr.rel (%p24) target = $region13
    $region12: #{tpu_custom_call.1} parent=1 // pred_region
      %vm27 = vcmask 64512
      %28 = vst.msk [vmem:[#allocation5] sm:$0xff] %vm27, 0.0
    $region13: #{tpu_custom_call.1} parent=1 // pred_fallthru
      _
    %v29 = vld [vmem:[#allocation2] sm:$0xff]
    %v30 = vld [vmem:[#allocation2 + $0x8] sm:$0xff]
    %v31 = vld [vmem:[#allocation5] sm:$0xff]
    %32 = vmatpush.xpose.msra.mxu0 0.0
    %33 = vmatpush.xpose.msra.mxu0 0.0
    %34 = vmatpush.xpose.msra.mxu0 0.0
    %35 = vmatpush.xpose.msra.mxu0 0.0
    %36 = vmatpush.xpose.msra.mxu0 0.0
    %37 = vmatpush.xpose.msra.mxu0 0.0
    %38 = vmatpush.xpose.msra.mxu0 0.0
    %39 = vmatpush.xpose.msra.mxu0 0.0
    %40 = vmatpush.xpose.msra.mxu0 0.0
    %41 = vmatpush.xpose.msra.mxu0 0.0
    %42 = vmatpush.xpose.msra.mxu0 0.0
    %43 = vmatpush.xpose.msra.mxu0 0.0
    %44 = vmatpush.xpose.msra.mxu0 0.0
    %45 = vmatpush.xpose.msra.mxu0 0.0
    %46 = vmatpush.xpose.msra.mxu0 0.0
    %47 = vmatpush.xpose.msra.mxu0 %v29
    %48 = vmatmul.f32.gmra.mxu0 %v29
    %v49 = vpop.f32.mrf.mxu0
    %v50 = vadd.f32 0.0, %v49
    %51 = vdwg.mxu0
    %52 = vmatpush.xpose.msra.mxu0 0.0
    %53 = vmatpush.xpose.msra.mxu0 0.0
    %54 = vmatpush.xpose.msra.mxu0 0.0
    %55 = vmatpush.xpose.msra.mxu0 0.0
    %56 = vmatpush.xpose.msra.mxu0 0.0
    %57 = vmatpush.xpose.msra.mxu0 0.0
    %58 = vmatpush.xpose.msra.mxu0 0.0
    %59 = vmatpush.xpose.msra.mxu0 0.0
    %60 = vmatpush.xpose.msra.mxu0 0.0
    %61 = vmatpush.xpose.msra.mxu0 0.0
    %62 = vmatpush.xpose.msra.mxu0 0.0
    %63 = vmatpush.xpose.msra.mxu0 0.0
    %64 = vmatpush.xpose.msra.mxu0 0.0
    %65 = vmatpush.xpose.msra.mxu0 0.0
    %66 = vmatpush.xpose.msra.mxu0 0.0
    %67 = vmatpush.xpose.msra.mxu0 %v30
    %68 = vmatmul.f32.gmra.mxu0 %v30
    %v69 = vpop.f32.mrf.mxu0
    %v70 = vadd.f32 %v50, %v69
    %71 = vdwg.mxu0
    %v72 = vadd.f32 %v31, %v70
    %vm73 = vcmask 64512
    %74 = vst.msk [vmem:[#allocation5] sm:$0xff] %vm73, %v72
    // Predicated region
    $region14: #{tpu_custom_call.1} parent=1 // pred_check
      %p75 = pneg %p23
    $region15: #{tpu_custom_call.1} parent=1 // pred_check_branch
      %77 = sbr.rel (%p75) target = $region17
    $region16: #{tpu_custom_call.1} parent=1 // pred_region
      %v78 = vld [vmem:[#allocation5] sm:$0xff]
      %v79 = vmul.f32 %v78, 0.00048828125
      %80 = vst.msk [vmem:[#allocation5] sm:$0xff] %vm73, %v79
    $region17: #{tpu_custom_call.1} parent=1 // pred_fallthru
      _
    // Predicated region
    $region18: #{tpu_custom_call.1} parent=1 // pred_check
      _
    $region19: #{tpu_custom_call.1} parent=1 // pred_check_branch
      %82 = sbr.rel (0) target = $region21
    $region20: #{tpu_custom_call.1} parent=1 // pred_region
      %84 = vsyncadd [#allocation4], 0
      %s86 = sshll.u32 [#allocation5], 4
      %s87 = int_to_ptr.vmem [resolvable:$true] %s86
      %s88 = sshll.u32 %s1, 4
      %s89 = int_to_ptr.hbm [resolvable:$true] %s88
      %91 = dma.vmem_to_hbm [thread:$0]  %s87, 128, %s89, [#allocation4]
    $region21: #{tpu_custom_call.1} parent=1 // pred_fallthru
      _
    // Predicated region
    $region22: #{tpu_custom_call.1} parent=1 // pred_check
      _
    $region23: #{tpu_custom_call.1} parent=1 // pred_check_branch
      %93 = sbr.rel (0) target = $region25
    $region24: #{tpu_custom_call.1} parent=1 // pred_region
      %95 = dma.done [#allocation4], 128
    $region25: #{tpu_custom_call.1} parent=1 // pred_fallthru
      _
    %96 = vsyncpa [#allocation3], 1
    %97 = vsyncpa [#allocation4], 1

</llo_original>
